<compile_context>
chip_gen: v7x
topology: tpu7x:2x2x1
jax: 0.10.0
libtpu: 0.0.40
codegen_flags: <defaults>
</compile_context>

<pallas_src>
import functools

import numpy as np
import jax
import jax.numpy as jnp
from jax import lax
from jax.experimental import pallas as pl
from jax.experimental.pallas import tpu as pltpu

NEG_INF = -1e30


# --------------------------------------------------------------------------------------
# Kernel
# --------------------------------------------------------------------------------------
def _ntxent_kernel(pos_ref, row_ref, col_ref, w_ref, out_ref, m_sc, l_sc,
                   *, cols_transposed, bf16_exp):
    j = pl.program_id(1)

    @pl.when(j == 0)
    def _init():
        # The positive is always one of the logits: start the online LSE from it.
        m_sc[...] = pos_ref[...]
        l_sc[...] = jnp.ones(l_sc.shape, l_sc.dtype)          # exp(pos - m) == 1

    # (tr, tc) cosine-similarity tile on the MXU (f32 accumulation).  When the column
    # operand is pre-transposed this is a plain (tr,K)x(K,tc) contraction, so no
    # per-tile transpose/relayout is needed inside the kernel.
    if cols_transposed:
        sim = lax.dot_general(row_ref[...], col_ref[...],
                              dimension_numbers=(((1,), (0,)), ((), ())),
                              preferred_element_type=jnp.float32)
    else:
        sim = lax.dot_general(row_ref[...], col_ref[...],
                              dimension_numbers=(((1,), (1,)), ((), ())),
                              preferred_element_type=jnp.float32)

    # Weights already carry 1/temperature; NaN sentinel marks masked entries (the
    # sentinel can never collide with a legitimate weight value, of any sign).
    w = w_ref[...].astype(jnp.float32)
    logits = jnp.where(jnp.isnan(w), NEG_INF, sim * w)

    m_prev = m_sc[...]
    m_new = jnp.maximum(m_prev, jnp.max(logits, axis=-1, keepdims=True))
    shifted = logits - m_new
    if bf16_exp:
        # v6e/v7x only (bf16 EUP): exp at bf16, lane-sum accumulated in f32; the
        # running max / sum / mask stay in f32 so the online LSE remains stable.
        p_sum = jnp.sum(jnp.exp(shifted.astype(jnp.bfloat16)).astype(jnp.float32),
                        axis=-1, keepdims=True)
    else:
        p_sum = jnp.sum(jnp.exp(shifted), axis=-1, keepdims=True)
    l_sc[...] = l_sc[...] * jnp.exp(m_prev - m_new) + p_sum
    m_sc[...] = m_new

    @pl.when(j == pl.num_programs(1) - 1)
    def _finalize():
        # CrossEntropy(label=0) per row: logsumexp(all logits) - positive logit.
        # (tr, 1) store happens once per row block, so the narrow-lane store is cheap.
        out_ref[...] = m_sc[...] + jnp.log(l_sc[...]) - pos_ref[...]


# --------------------------------------------------------------------------------------
# Tiling helpers
# --------------------------------------------------------------------------------------
def _round_up(x, m):
    return ((x + m - 1) // m) * m


def _pick_tile(dim, target, quantum):
    """Largest multiple of `quantum` that divides `dim` and is <= max(target, quantum)."""
    if dim % quantum != 0:
        return dim                      # only reachable when quantum == dim (full tile)
    best = quantum
    t = quantum
    while t <= min(max(target, quantum), dim):
        if dim % t == 0:
            best = t
        t += quantum
    return best


def _vmem_capacity_bytes():
    try:
        cap = getattr(pltpu.get_tpu_info(), "vmem_capacity_bytes", None)
        if cap:
            return int(cap)
    except Exception:
        pass
    return 64 * 1024 * 1024             # conservative default (v7x physical size)


def _vmem_estimate(tr, tc, d, cbytes, wbytes):
    """Rough per-step VMEM working set (double-buffered inputs + f32 temps)."""
    est = 2 * tr * d * cbytes           # row tile (double-buffered)
    est += 2 * tc * d * cbytes          # col tile (either orientation)
    est += 2 * tr * tc * wbytes         # weight tile
    est += 3 * tr * tc * 4              # f32 logits / exp intermediates
    est += 8 * tr * 128 * 4             # (tr,1) pos/out/m/l tiles (lane-padded)
    return est


# --------------------------------------------------------------------------------------
# Wrapper
# --------------------------------------------------------------------------------------
def weighted_ntxent_loss(x1, x2, tanimoto, *, temperature=0.1, lambda_1=0.5,
                         compute_dtype=jnp.bfloat16, weight_dtype=jnp.bfloat16,
                         block_rows=512, block_cols=512, pad_multiple=None,
                         bf16_exp=False):
    """x1, x2: (B, D) representations.  tanimoto: (B, B) symmetric molecular similarity.

    bf16_exp=True is a v6e/v7x-only throughput option (bf16 EUP); leave False on v5e.
    """
    b, d = x1.shape
    assert x2.shape == (b, d) and tanimoto.shape == (b, b)
    inv_t = 1.0 / temperature

    # ---- padding (fixes the unaligned-batch tile blowup) --------------------------
    if pad_multiple is None:
        # Small / aligned batches only need the 8-row sublane quantum; large unaligned
        # batches are padded to 128 so column & weight tiles stay lane-aligned instead
        # of degenerating to a full-width (tr, B) tile.
        pad_multiple = 8 if (b % 128 == 0 or b <= 512) else 128
    bp = _round_up(b, pad_multiple)
    n_real = 2 * b
    n = 2 * bp

    # ---- host-side prep (normalization / positives / weights hoisted out of kernel) --
    reps = jnp.zeros((n, d), jnp.float32)
    reps = reps.at[:b].set(x2.astype(jnp.float32))
    reps = reps.at[bp:bp + b].set(x1.astype(jnp.float32))
    norms = jnp.sqrt(jnp.sum(reps * reps, axis=-1, keepdims=True))
    rn32 = reps / jnp.maximum(norms, 1e-8)                    # padded rows stay exactly 0
    # Positive logits in f32 (partner row is i +/- Bp); padded rows give 0.
    pos = jnp.sum(rn32 * jnp.roll(rn32, -bp, axis=0), axis=-1, keepdims=True) * inv_t
    rn = rn32.astype(compute_dtype)

    # Fingerprint weights with 1/temperature folded in; NaN sentinel marks the masked
    # (i%Bp == j%Bp) positions and the padding, so legitimate weights of any sign are
    # never confused with the mask.
    w = (1.0 - lambda_1 * tanimoto.astype(jnp.float32)) * inv_t
    w = jnp.where(jnp.eye(b, dtype=bool), jnp.nan, w)
    if bp > b:
        w = jnp.pad(w, ((0, bp - b), (0, bp - b)), constant_values=jnp.nan)
    w = w.astype(weight_dtype)

    # ---- tile selection --------------------------------------------------------------
    cbytes = jnp.dtype(compute_dtype).itemsize
    wbytes = jnp.dtype(weight_dtype).itemsize
    tr_q = 128 if bp % 128 == 0 else (16 if bp % 16 == 0 else 8)
    tc_q = 128 if bp % 128 == 0 else bp      # weight-tile lane dim: 128-aligned or full
    # Keep >= 4 row blocks when possible so v7x's two TensorCores shard evenly
    # (tr divides Bp, so the row-block count 2Bp/tr is always even).
    tr = _pick_tile(bp, min(block_rows, max(bp // 2, tr_q)), tr_q)
    tc = _pick_tile(bp, block_cols, tc_q)

    vmem_cap = _vmem_capacity_bytes()
    vmem_limit = max(min((vmem_cap * 3) // 4, 100 * 1024 * 1024), 32 * 1024 * 1024)
    budget = (vmem_limit * 4) // 5
    while _vmem_estimate(tr, tc, d, cbytes, wbytes) > budget:
        if tr > tr_q and (tr >= tc or tc <= tc_q):
            tr = _pick_tile(bp, max(tr // 2, tr_q), tr_q)
        elif tc > tc_q:
            tc = _pick_tile(bp, max(tc // 2, tc_q), tc_q)
        else:
            break

    nbr, nbc = n // tr, n // tc
    hbr, hbc = bp // tr, bp // tc

    # Column operand: pre-transposed (D, 2Bp) when the tile is lane-aligned, so the MXU
    # contraction is transpose-free; otherwise fall back to (tc, D) with a last/last
    # contraction (small / unaligned batches).
    cols_transposed = (tc % 128 == 0)
    if cols_transposed:
        col_arg = jnp.transpose(rn)                             # (D, 2Bp)
        col_spec = pl.BlockSpec((d, tc), lambda i, j: (0, j))
    else:
        col_arg = rn
        col_spec = pl.BlockSpec((tc, d), lambda i, j: (j, 0))

    kernel = functools.partial(_ntxent_kernel,
                               cols_transposed=cols_transposed, bf16_exp=bf16_exp)

    cost = pl.CostEstimate(
        flops=int(2 * n * n * d),
        transcendentals=int(n * n),
        bytes_accessed=int(n * d * cbytes * (1 + nbr) + n * n * wbytes + 2 * n * 4))

    per_row = pl.pallas_call(
        kernel,
        out_shape=jax.ShapeDtypeStruct((n, 1), jnp.float32),
        grid_spec=pltpu.PrefetchScalarGridSpec(
            num_scalar_prefetch=0,
            grid=(nbr, nbc),
            in_specs=[
                pl.BlockSpec((tr, 1), lambda i, j: (i, 0)),                 # positive logits
                pl.BlockSpec((tr, d), lambda i, j: (i, 0)),                 # normalized rows
                col_spec,                                                   # normalized cols
                pl.BlockSpec((tr, tc), lambda i, j: (i % hbr, j % hbc)),    # wrapped weights
            ],
            out_specs=pl.BlockSpec((tr, 1), lambda i, j: (i, 0)),
            scratch_shapes=[
                pltpu.VMEM((tr, 1), jnp.float32),    # running max
                pltpu.VMEM((tr, 1), jnp.float32),    # running sum-exp
            ]),
        compiler_params=pltpu.CompilerParams(
            dimension_semantics=("parallel", "arbitrary"),
            vmem_limit_bytes=vmem_limit),
        cost_estimate=cost,
    )(pos, rn, col_arg, w)

    # Padded rows contribute exactly 0, so sum everything and divide by the real 2B.
    return jnp.sum(per_row) / n_real


# --------------------------------------------------------------------------------------
# Reference (pure numpy port of the PyTorch forward)
# --------------------------------------------------------------------------------------
def _bf16_round(x):
    return np.asarray(jnp.asarray(x, jnp.float32).astype(jnp.bfloat16).astype(jnp.float32))


def _reference_loss(x1, x2, tanimoto, temperature=0.1, lambda_1=0.5, quantize=False):
    x1 = np.asarray(x1, np.float32)
    x2 = np.asarray(x2, np.float32)
    tan = np.asarray(tanimoto, np.float32)
    b = x1.shape[0]
    n = 2 * b
    inv_t = 1.0 / temperature
    reps = np.concatenate([x2, x1], axis=0)
    rn = reps / np.maximum(np.sqrt((reps * reps).sum(-1, keepdims=True)), 1e-8)
    sim_pos = rn @ rn.T                                      # positives always f32
    rn_neg = _bf16_round(rn) if quantize else rn
    sim_neg = rn_neg @ rn_neg.T
    w = (1.0 - lambda_1 * tan) * inv_t
    if quantize:
        w = _bf16_round(w)
    W = np.tile(w, (2, 2))                                   # logical weight = w[i%B, j%B]
    positives = np.concatenate(
        [np.diagonal(sim_pos, b), np.diagonal(sim_pos, -b)]).reshape(n, 1) * inv_t
    mask = ~((np.eye(n) + np.eye(n, k=b) + np.eye(n, k=-b)).astype(bool))
    negatives = (sim_neg * W)[mask].reshape(n, n - 2)
    logits = np.concatenate([positives, negatives], axis=1)
    m = logits.max(axis=1, keepdims=True)
    lse = m[:, 0] + np.log(np.exp(logits - m).sum(axis=1))
    return float(np.sum(lse - logits[:, 0]) / n)


# --------------------------------------------------------------------------------------
# Demo / self-test
# --------------------------------------------------------------------------------------
if __name__ == "__main__":
    B, D = 8, 32
    key = jax.random.PRNGKey(0)
    k1, k2, k3 = jax.random.split(key, 3)
    x1 = jax.random.normal(k1, (B, D), dtype=jnp.float32)
    x2 = jax.random.normal(k2, (B, D), dtype=jnp.float32)
    # Deterministic synthetic Tanimoto-like similarity: symmetric, [0, 1], zero diagonal.
    u = jax.random.uniform(k3, (B, B), dtype=jnp.float32)
    tanimoto = (u + u.T) * 0.5 * (1.0 - jnp.eye(B, dtype=jnp.float32))

    ref_f32 = _reference_loss(x1, x2, tanimoto, 0.1, 0.5, quantize=False)
    ref_bf16 = _reference_loss(x1, x2, tanimoto, 0.1, 0.5, quantize=True)

    # 1) Default fast path: bf16 MXU operands + bf16 weights, f32 accumulation & LSE.
    loss = jax.block_until_ready(weighted_ntxent_loss(x1, x2, tanimoto))
    np.testing.assert_allclose(float(loss), ref_bf16, rtol=1e-2, atol=1e-2)
    np.testing.assert_allclose(float(loss), ref_f32, rtol=5e-2, atol=5e-2)

    # 2) Padded / lane-aligned path: pad B -> 128 to exercise the transpose-free MXU
    #    column layout and the padding mask (padded rows contribute exactly zero).
    loss_pad = jax.block_until_ready(
        weighted_ntxent_loss(x1, x2, tanimoto, pad_multiple=128))
    np.testing.assert_allclose(float(loss_pad), ref_bf16, rtol=1e-2, atol=1e-2)

    # 3) Full-f32 path (same kernel, f32 matmul operands and f32 weights).
    loss_f32 = jax.block_until_ready(
        weighted_ntxent_loss(x1, x2, tanimoto, compute_dtype=jnp.float32,
                             weight_dtype=jnp.float32))
    np.testing.assert_allclose(float(loss_f32), ref_f32, rtol=1e-2, atol=1e-2)

    # 4) Optional v6e/v7x bf16-exp throughput mode (correct on all generations).
    loss_bexp = jax.block_until_ready(
        weighted_ntxent_loss(x1, x2, tanimoto, bf16_exp=True))
    np.testing.assert_allclose(float(loss_bexp), ref_bf16, rtol=2e-2, atol=2e-2)

    print("KERNEL_OK")
</pallas_src>

<mosaic_0001>
module attributes {stable_mosaic.version = 11 : i64} {
  func.func @_ntxent_kernel(%arg0: i32, %arg1: i32, %arg2: memref<8x1xf32, #tpu.memory_space<vmem>>, %arg3: memref<8x32xbf16, #tpu.memory_space<vmem>>, %arg4: memref<8x32xbf16, #tpu.memory_space<vmem>>, %arg5: memref<8x8xbf16, #tpu.memory_space<vmem>>, %arg6: memref<8x1xf32, #tpu.memory_space<vmem>>, %arg7: memref<8x1xf32, #tpu.memory_space<vmem>>, %arg8: memref<8x1xf32, #tpu.memory_space<vmem>>) attributes {dimension_semantics = [#tpu.dimension_semantics<parallel>, #tpu.dimension_semantics<arbitrary>], iteration_bounds = array<i64: 2, 2>, scalar_prefetch = 0 : i64, scratch_operands = 2 : i64, tpu.core_type = #tpu.core_type<tc>, window_params = [{transform_indices = @transform_0, window_bounds = array<i64: 8, 1>}, {transform_indices = @transform_1, window_bounds = array<i64: 8, 32>}, {transform_indices = @transform_2, window_bounds = array<i64: 8, 32>}, {transform_indices = @transform_3, window_bounds = array<i64: 8, 8>}, {transform_indices = @transform_4, window_bounds = array<i64: 8, 1>}]} {
    %c0_i32 = arith.constant 0 : i32
    %0 = arith.cmpi eq, %arg1, %c0_i32 : i32
    %1 = arith.extui %0 : i1 to i32
    %c0_i32_0 = arith.constant 0 : i32
    %2 = arith.cmpi ne, %1, %c0_i32_0 : i32
    scf.if %2 {
      %c0_18 = arith.constant 0 : index
      %c0_19 = arith.constant 0 : index
      %31 = vector.load %arg2[%c0_18, %c0_19] : memref<8x1xf32, #tpu.memory_space<vmem>>, vector<8x1xf32>
      %c0_20 = arith.constant 0 : index
      %c0_21 = arith.constant 0 : index
      %32 = vector.load %arg7[%c0_20, %c0_21] : memref<8x1xf32, #tpu.memory_space<vmem>>, vector<8x1xf32>
      tpu.vector_store %arg7[%c0_20, %c0_21], %31 {strides = array<i32>} : memref<8x1xf32, #tpu.memory_space<vmem>>, vector<8x1xf32>,
      %cst_22 = arith.constant 1.000000e+00 : f32
      %33 = vector.broadcast %cst_22 : f32 to vector<8x1xf32>
      %c0_23 = arith.constant 0 : index
      %c0_24 = arith.constant 0 : index
      %34 = vector.load %arg8[%c0_23, %c0_24] : memref<8x1xf32, #tpu.memory_space<vmem>>, vector<8x1xf32>
      tpu.vector_store %arg8[%c0_23, %c0_24], %33 {strides = array<i32>} : memref<8x1xf32, #tpu.memory_space<vmem>>, vector<8x1xf32>,
    } else {
    }
    %c0 = arith.constant 0 : index
    %c0_1 = arith.constant 0 : index
    %3 = vector.load %arg3[%c0, %c0_1] : memref<8x32xbf16, #tpu.memory_space<vmem>>, vector<8x32xbf16>
    %c0_2 = arith.constant 0 : index
    %c0_3 = arith.constant 0 : index
    %4 = vector.load %arg4[%c0_2, %c0_3] : memref<8x32xbf16, #tpu.memory_space<vmem>>, vector<8x32xbf16>
    %cst = arith.constant dense<0.000000e+00> : vector<8x8xf32>
    %5 = tpu.matmul %3, %4, %cst {dimension_numbers = #tpu.dot_dimension_numbers<[1], [1], [0], [0], [0, 0, 1, 0], [], []>} : vector<8x32xbf16>, vector<8x32xbf16>, vector<8x8xf32> -> vector<8x8xf32>
    %c0_4 = arith.constant 0 : index
    %c0_5 = arith.constant 0 : index
    %6 = vector.load %arg5[%c0_4, %c0_5] : memref<8x8xbf16, #tpu.memory_space<vmem>>, vector<8x8xbf16>
    %7 = arith.extf %6 : vector<8x8xbf16> to vector<8x8xf32>
    %8 = arith.cmpf one, %7, %7 : vector<8x8xf32>
    %9 = arith.mulf %5, %7 : vector<8x8xf32>
    %cst_6 = arith.constant -1.000000e+30 : f32
    %10 = vector.broadcast %cst_6 : f32 to vector<8x8xf32>
    %11 = arith.select %8, %10, %9 : vector<8x8xi1>, vector<8x8xf32>
    %c0_7 = arith.constant 0 : index
    %c0_8 = arith.constant 0 : index
    %12 = vector.load %arg7[%c0_7, %c0_8] : memref<8x1xf32, #tpu.memory_space<vmem>>, vector<8x1xf32>
    %cst_9 = arith.constant dense<0xFF800000> : vector<8xf32>
    %13 = vector.multi_reduction <maximumf>, %11, %cst_9 [1] : vector<8x8xf32> to vector<8xf32>
    %14 = vector.shape_cast %13 : vector<8xf32> to vector<8x1xf32>
    %15 = arith.maximumf %12, %14 : vector<8x1xf32>
    %16 = vector.broadcast %15 : vector<8x1xf32> to vector<8x8xf32>
    %17 = arith.subf %11, %16 : vector<8x8xf32>
    %18 = math.exp %17 : vector<8x8xf32>
    %cst_10 = arith.constant dense<0.000000e+00> : vector<8xf32>
    %19 = vector.multi_reduction <add>, %18, %cst_10 [1] : vector<8x8xf32> to vector<8xf32>
    %20 = vector.shape_cast %19 : vector<8xf32> to vector<8x1xf32>
    %c0_11 = arith.constant 0 : index
    %c0_12 = arith.constant 0 : index
    %21 = vector.load %arg8[%c0_11, %c0_12] : memref<8x1xf32, #tpu.memory_space<vmem>>, vector<8x1xf32>
    %22 = arith.subf %12, %15 : vector<8x1xf32>
    %23 = math.exp %22 : vector<8x1xf32>
    %24 = arith.mulf %21, %23 : vector<8x1xf32>
    %25 = arith.addf %24, %20 : vector<8x1xf32>
    %c0_13 = arith.constant 0 : index
    %c0_14 = arith.constant 0 : index
    %26 = vector.load %arg8[%c0_13, %c0_14] : memref<8x1xf32, #tpu.memory_space<vmem>>, vector<8x1xf32>
    tpu.vector_store %arg8[%c0_13, %c0_14], %25 {strides = array<i32>} : memref<8x1xf32, #tpu.memory_space<vmem>>, vector<8x1xf32>,
    %c0_15 = arith.constant 0 : index
    %c0_16 = arith.constant 0 : index
    %27 = vector.load %arg7[%c0_15, %c0_16] : memref<8x1xf32, #tpu.memory_space<vmem>>, vector<8x1xf32>
    tpu.vector_store %arg7[%c0_15, %c0_16], %15 {strides = array<i32>} : memref<8x1xf32, #tpu.memory_space<vmem>>, vector<8x1xf32>,
    %c1_i32 = arith.constant 1 : i32
    %28 = arith.cmpi eq, %arg1, %c1_i32 : i32
    %29 = arith.extui %28 : i1 to i32
    %c0_i32_17 = arith.constant 0 : i32
    %30 = arith.cmpi ne, %29, %c0_i32_17 : i32
    scf.if %30 {
      %c0_18 = arith.constant 0 : index
      %c0_19 = arith.constant 0 : index
      %31 = vector.load %arg7[%c0_18, %c0_19] : memref<8x1xf32, #tpu.memory_space<vmem>>, vector<8x1xf32>
      %c0_20 = arith.constant 0 : index
      %c0_21 = arith.constant 0 : index
      %32 = vector.load %arg8[%c0_20, %c0_21] : memref<8x1xf32, #tpu.memory_space<vmem>>, vector<8x1xf32>
      %33 = math.log %32 : vector<8x1xf32>
      %34 = arith.addf %31, %33 : vector<8x1xf32>
      %c0_22 = arith.constant 0 : index
      %c0_23 = arith.constant 0 : index
      %35 = vector.load %arg2[%c0_22, %c0_23] : memref<8x1xf32, #tpu.memory_space<vmem>>, vector<8x1xf32>
      %36 = arith.subf %34, %35 : vector<8x1xf32>
      %c0_24 = arith.constant 0 : index
      %c0_25 = arith.constant 0 : index
      %37 = vector.load %arg6[%c0_24, %c0_25] : memref<8x1xf32, #tpu.memory_space<vmem>>, vector<8x1xf32>
      tpu.vector_store %arg6[%c0_24, %c0_25], %36 {strides = array<i32>} : memref<8x1xf32, #tpu.memory_space<vmem>>, vector<8x1xf32>,
    } else {
    }
    return
  }
  func.func @transform_0(%arg0: i32, %arg1: i32) -> (i32, i32) {
    %c0_i32 = arith.constant 0 : i32
    %c0_i32_0 = arith.constant 0 : i32
    return %arg0, %c0_i32 : i32, i32
  }
  func.func @transform_1(%arg0: i32, %arg1: i32) -> (i32, i32) {
    %c0_i32 = arith.constant 0 : i32
    %c0_i32_0 = arith.constant 0 : i32
    return %arg0, %c0_i32 : i32, i32
  }
  func.func @transform_2(%arg0: i32, %arg1: i32) -> (i32, i32) {
    %c0_i32 = arith.constant 0 : i32
    %c0_i32_0 = arith.constant 0 : i32
    return %arg1, %c0_i32 : i32, i32
  }
  func.func @transform_3(%arg0: i32, %arg1: i32) -> (i32, i32) {
    %c1_i32 = arith.constant 1 : i32
    %c0_i32 = arith.constant 0 : i32
    %0 = arith.cmpi eq, %c1_i32, %c0_i32 : i32
    %c1_i32_0 = arith.constant 1 : i32
    %1 = arith.select %0, %c1_i32_0, %c1_i32 : i32
    %2 = arith.remsi %arg0, %1 : i32
    %c0_i32_1 = arith.constant 0 : i32
    %3 = arith.cmpi ne, %2, %c0_i32_1 : i32
    %c0_i32_2 = arith.constant 0 : i32
    %4 = arith.cmpi slt, %2, %c0_i32_2 : i32
    %c0_i32_3 = arith.constant 0 : i32
    %5 = arith.cmpi slt, %1, %c0_i32_3 : i32
    %6 = arith.xori %4, %5 : i1
    %7 = arith.andi %6, %3 : i1
    %8 = arith.addi %2, %1 : i32
    %9 = arith.select %7, %8, %2 : i32
    %c1_i32_4 = arith.constant 1 : i32
    %c0_i32_5 = arith.constant 0 : i32
    %10 = arith.cmpi eq, %c1_i32_4, %c0_i32_5 : i32
    %c1_i32_6 = arith.constant 1 : i32
    %11 = arith.select %10, %c1_i32_6, %c1_i32_4 : i32
    %12 = arith.remsi %arg1, %11 : i32
    %c0_i32_7 = arith.constant 0 : i32
    %13 = arith.cmpi ne, %12, %c0_i32_7 : i32
    %c0_i32_8 = arith.constant 0 : i32
    %14 = arith.cmpi slt, %12, %c0_i32_8 : i32
    %c0_i32_9 = arith.constant 0 : i32
    %15 = arith.cmpi slt, %11, %c0_i32_9 : i32
    %16 = arith.xori %14, %15 : i1
    %17 = arith.andi %16, %13 : i1
    %18 = arith.addi %12, %11 : i32
    %19 = arith.select %17, %18, %12 : i32
    %c0_i32_10 = arith.constant 0 : i32
    return %9, %19 : i32, i32
  }
  func.func @transform_4(%arg0: i32, %arg1: i32) -> (i32, i32) {
    %c0_i32 = arith.constant 0 : i32
    %c0_i32_0 = arith.constant 0 : i32
    return %arg0, %c0_i32 : i32, i32
  }
}

</mosaic_0001>

<llo_original>
// kernel: tpu_custom_call.1
$region0: #{tpu_custom_call.1}
  #allocation0 [shape = 'u32[]', space=smem, size = 0x4, offset = 0x4, fixed_abs, tag = 'smem constant byte address 0x4 - core index']
  #allocation1 [shape = 'u32[144,128]{1,0:T(1,128)}', space=vmem, size = 0x12000, scoped, tag = 'internal scratch']
  #allocation2 [shape = 'f32[8,1]{1,0:T(8,128)}', space=vmem, size = 0x1000, scoped, tag = 'scratch operand']
  #allocation3 [shape = 'f32[8,1]{1,0:T(8,128)}', space=vmem, size = 0x1000, scoped, tag = 'scratch operand']
  %s0 = inlined_call_operand.vmem [shape: f32[16,1], index: 0, kind: input, shape index: {}]
  %s1 = inlined_call_operand.vmem [shape: bf16[16,32], index: 1, kind: input, shape index: {}]
  %s2 = inlined_call_operand.vmem [shape: bf16[16,32], index: 2, kind: input, shape index: {}]
  %s3 = inlined_call_operand.vmem [shape: bf16[8,8], index: 3, kind: input, shape index: {}]
  %s4 = inlined_call_operand.vmem [shape: f32[16,1], index: 4, kind: output, shape index: {}]
  %s5 = sld [smem:[#allocation0]]
  $region57: #{tpu_custom_call.1} parent=0
    _
  %s7 = ssub.s32 1, %s5
  %s8 = scalar_select 0, %s7, %s5
  loop: start=0, step=1, limit=6
  $region2: #{tpu_custom_call.1} parent=0 // loop_pre_header
    _
  $region3: #{tpu_custom_call.1} parent=0 // loop_header
    %s10 = sphi 0, %s14
    %p11 = scmp.ge.s32.totalorder %s10, 6
    %s17 = sphi 0, %s29
    %s18 = sphi 0, %s25
    %s19 = sphi 0, %s17
    %s20 = sphi 0, %s18
    %s21 = sphi 0, %s19
    %s22 = sphi 0, %s20
    %s32 = sphi 0, %s34
    %s35 = sphi 0, %s32
    %s36 = sphi 0, %s35
    %s52 = sphi 0, %s36
    %s58 = sphi 0, %s60
    %s61 = sphi 0, %s58
    %s62 = sphi 0, %s61
    %s78 = sphi 0, %s62
    %s84 = sphi 0, %s86
    %s87 = sphi 0, %s84
    %s88 = sphi 0, %s87
    %s104 = sphi 0, %s88
    %s108 = sphi 0, %s108
    %s110 = sphi 0, %s108
    %s111 = sphi 0, %s110
    %s125 = sphi 0, %s111
    %s131 = sphi 0, %s133
    %s134 = sphi 0, %s131
    %s135 = sphi 0, %s134
    %s151 = sphi 0, %s135
  $region4: #{tpu_custom_call.1} parent=0 // loop_header_branch
    %13 = sbr.rel (%p11) target = $region8
  $region5: #{tpu_custom_call.1} parent=0 // loop_body
    %s15 = ssub.s32 %s10, 1
    %s16 = ssub.s32 %s10, 2
    %s23 = sadd.s32 1, %s18
    %p24 = scmp.ge.s32.totalorder %s23, 2
    %s25 = scalar_select %p24, 0, %s23
    %s26 = sadd.s32 1, %s17
    %s27 = scalar_select %p24, %s26, %s17
    %p28 = scmp.ge.s32.totalorder %s27, 2
    %s29 = scalar_select %p28, 0, %s27
    %s30 = ssub.s32 %s17, %s29
    %p31 = scmp.eq.s32.totalorder %s30, 0
    %s33 = sadd.s32 %s32, 1
    %s34 = scalar_select %p31, %s32, %s33
    %p37 = pneg %p31
    %p38 = scmp.eq.s32.totalorder %s10, 3
    %p39 = por %p37, %p38
    %p40 = scmp.ne.s32.totalorder %s32, %s35
    %p41 = scmp.eq.s32.totalorder %s10, 0
    %p42 = por %p40, %p41
    %p43 = scmp.ne.s32.totalorder %s32, %s35
    %p44 = scmp.eq.s32.totalorder %s15, 3
    %p45 = por %p43, %p44
    %p46 = scmp.ne.s32.totalorder %s35, %s36
    %p47 = scmp.eq.s32.totalorder %s15, 0
    %p48 = por %p46, %p47
    %p49 = scmp.ne.s32.totalorder %s35, %s36
    %p50 = scmp.eq.s32.totalorder %s16, 3
    %p51 = por %p49, %p50
    %p53 = scmp.ne.s32.totalorder %s36, %s52
    %p54 = scmp.eq.s32.totalorder %s16, 0
    %p55 = por %p53, %p54
    %s56 = ssub.s32 %s17, %s29
    %p57 = scmp.eq.s32.totalorder %s56, 0
    %s59 = sadd.s32 %s58, 1
    %s60 = scalar_select %p57, %s58, %s59
    %p63 = pneg %p57
    %p64 = scmp.eq.s32.totalorder %s10, 3
    %p65 = por %p63, %p64
    %p66 = scmp.ne.s32.totalorder %s58, %s61
    %p67 = scmp.eq.s32.totalorder %s10, 0
    %p68 = por %p66, %p67
    %p69 = scmp.ne.s32.totalorder %s58, %s61
    %p70 = scmp.eq.s32.totalorder %s15, 3
    %p71 = por %p69, %p70
    %p72 = scmp.ne.s32.totalorder %s61, %s62
    %p73 = scmp.eq.s32.totalorder %s15, 0
    %p74 = por %p72, %p73
    %p75 = scmp.ne.s32.totalorder %s61, %s62
    %p76 = scmp.eq.s32.totalorder %s16, 3
    %p77 = por %p75, %p76
    %p79 = scmp.ne.s32.totalorder %s62, %s78
    %p80 = scmp.eq.s32.totalorder %s16, 0
    %p81 = por %p79, %p80
    %s82 = ssub.s32 %s18, %s25
    %p83 = scmp.eq.s32.totalorder %s82, 0
    %s85 = sadd.s32 %s84, 1
    %s86 = scalar_select %p83, %s84, %s85
    %p89 = pneg %p83
    %p90 = scmp.eq.s32.totalorder %s10, 3
    %p91 = por %p89, %p90
    %p92 = scmp.ne.s32.totalorder %s84, %s87
    %p93 = scmp.eq.s32.totalorder %s10, 0
    %p94 = por %p92, %p93
    %p95 = scmp.ne.s32.totalorder %s84, %s87
    %p96 = scmp.eq.s32.totalorder %s15, 3
    %p97 = por %p95, %p96
    %p98 = scmp.ne.s32.totalorder %s87, %s88
    %p99 = scmp.eq.s32.totalorder %s15, 0
    %p100 = por %p98, %p99
    %p101 = scmp.ne.s32.totalorder %s87, %s88
    %p102 = scmp.eq.s32.totalorder %s16, 3
    %p103 = por %p101, %p102
    %p105 = scmp.ne.s32.totalorder %s88, %s104
    %p106 = scmp.eq.s32.totalorder %s16, 0
    %p107 = por %p105, %p106
    %s109 = sadd.s32 %s108, 1
    %p112 = scmp.eq.s32.totalorder %s10, 3
    %p113 = scmp.ne.s32.totalorder %s108, %s110
    %p114 = scmp.eq.s32.totalorder %s10, 0
    %p115 = por %p113, %p114
    %p116 = scmp.ne.s32.totalorder %s108, %s110
    %p117 = scmp.eq.s32.totalorder %s15, 3
    %p118 = por %p116, %p117
    %p119 = scmp.ne.s32.totalorder %s110, %s111
    %p120 = scmp.eq.s32.totalorder %s15, 0
    %p121 = por %p119, %p120
    %p122 = scmp.ne.s32.totalorder %s110, %s111
    %p123 = scmp.eq.s32.totalorder %s16, 3
    %p124 = por %p122, %p123
    %p126 = scmp.ne.s32.totalorder %s111, %s125
    %p127 = scmp.eq.s32.totalorder %s16, 0
    %p128 = por %p126, %p127
    %s129 = ssub.s32 %s17, %s29
    %p130 = scmp.eq.s32.totalorder %s129, 0
    %s132 = sadd.s32 %s131, 1
    %s133 = scalar_select %p130, %s131, %s132
    %p136 = pneg %p130
    %p137 = scmp.eq.s32.totalorder %s10, 3
    %p138 = por %p136, %p137
    %p139 = scmp.ne.s32.totalorder %s131, %s134
    %p140 = scmp.eq.s32.totalorder %s10, 0
    %p141 = por %p139, %p140
    %p142 = scmp.ne.s32.totalorder %s131, %s134
    %p143 = scmp.eq.s32.totalorder %s15, 3
    %p144 = por %p142, %p143
    %p145 = scmp.ne.s32.totalorder %s134, %s135
    %p146 = scmp.eq.s32.totalorder %s15, 0
    %p147 = por %p145, %p146
    %p148 = scmp.ne.s32.totalorder %s134, %s135
    %p149 = scmp.eq.s32.totalorder %s16, 3
    %p150 = por %p148, %p149
    %p152 = scmp.ne.s32.totalorder %s135, %s151
    %p153 = scmp.eq.s32.totalorder %s16, 0
    %p154 = por %p152, %p153
    %p155 = scmp.le.s32.totalorder 1, %s10
    %p156 = scmp.lt.s32.totalorder %s10, 5
    %p157 = pnand %p155, %p156
    %p158 = pneg %p157
    // Predicated region
    $region9: #{tpu_custom_call.1} parent=5 // pred_check
      _
    $region10: #{tpu_custom_call.1} parent=5 // pred_check_branch
      %160 = sbr.rel (%p157) target = $region12
    $region11: #{tpu_custom_call.1} parent=5 // pred_region
      %s161 = ssub.s32 %s10, 1
      // Predicated region
      $region13: #{tpu_custom_call.1} parent=11 // pred_check
        %p162 = pneg %p121
      $region14: #{tpu_custom_call.1} parent=11 // pred_check_branch
        %164 = sbr.rel (%p162) target = $region16
      $region15: #{tpu_custom_call.1} parent=11 // pred_region
        _
      $region16: #{tpu_custom_call.1} parent=11 // pred_fallthru
        _
    $region12: #{tpu_custom_call.1} parent=5 // pred_fallthru
      _
    %p165 = scmp.lt.s32.totalorder %s10, 4
    // Predicated region
    $region17: #{tpu_custom_call.1} parent=5 // pred_check
      %p166 = pneg %p165
    $region18: #{tpu_custom_call.1} parent=5 // pred_check_branch
      %168 = sbr.rel (%p166) target = $region20
    $region19: #{tpu_custom_call.1} parent=5 // pred_region
      // Predicated region
      $region21: #{tpu_custom_call.1} parent=19 // pred_check
        %p169 = pneg %p42
      $region22: #{tpu_custom_call.1} parent=19 // pred_check_branch
        %171 = sbr.rel (%p169) target = $region24
      $region23: #{tpu_custom_call.1} parent=19 // pred_region
        %p172 = scmp.lt.s32.totalorder %s17, 1
        %s173 = scalar_select %p172, %s17, 1
        %s174 = smul.addr %s173, 8
        %s175 = scalar_lea.vmem %s0, %s174
      $region24: #{tpu_custom_call.1} parent=19 // pred_fallthru
        _
      // Predicated region
      $region25: #{tpu_custom_call.1} parent=19 // pred_check
        %p176 = pneg %p68
      $region26: #{tpu_custom_call.1} parent=19 // pred_check_branch
        %178 = sbr.rel (%p176) target = $region28
      $region27: #{tpu_custom_call.1} parent=19 // pred_region
        %p179 = scmp.lt.s32.totalorder %s17, 1
        %s180 = scalar_select %p179, %s17, 1
        %s181 = smul.addr %s180, 4
        %s182 = scalar_lea.vmem %s1, %s181
      $region28: #{tpu_custom_call.1} parent=19 // pred_fallthru
        _
      // Predicated region
      $region29: #{tpu_custom_call.1} parent=19 // pred_check
        %p183 = pneg %p94
      $region30: #{tpu_custom_call.1} parent=19 // pred_check_branch
        %185 = sbr.rel (%p183) target = $region32
      $region31: #{tpu_custom_call.1} parent=19 // pred_region
        %p186 = scmp.lt.s32.totalorder %s18, 1
        %s187 = scalar_select %p186, %s18, 1
        %s188 = smul.addr %s187, 4
        %s189 = scalar_lea.vmem %s2, %s188
      $region32: #{tpu_custom_call.1} parent=19 // pred_fallthru
        _
    $region20: #{tpu_custom_call.1} parent=5 // pred_fallthru
      _
    %p190 = scmp.le.s32.totalorder 1, %s10
    %p191 = scmp.lt.s32.totalorder %s10, 5
    %p192 = pnand %p190, %p191
    %p193 = pneg %p192
    // Predicated region
    $region33: #{tpu_custom_call.1} parent=5 // pred_check
      _
    $region34: #{tpu_custom_call.1} parent=5 // pred_check_branch
      %195 = sbr.rel (%p192) target = $region36
    $region35: #{tpu_custom_call.1} parent=5 // pred_region
      %s196 = ssub.s32 %s10, 1
      %p197 = scmp.lt.s32.totalorder %s19, 1
      %s198 = scalar_select %p197, %s19, 1
      %s199 = smul.addr %s198, 8
      %s200 = scalar_lea.vmem %s0, %s199
      %p201 = pneg %p48
      %p202 = pneg %p45
      %p203 = scmp.lt.s32.totalorder %s19, 1
      %s204 = scalar_select %p203, %s19, 1
      %s205 = smul.addr %s204, 4
      %s206 = scalar_lea.vmem %s1, %s205
      %p207 = pneg %p74
      %p208 = pneg %p71
      %p209 = scmp.lt.s32.totalorder %s20, 1
      %s210 = scalar_select %p209, %s20, 1
      %s211 = smul.addr %s210, 4
      %s212 = scalar_lea.vmem %s2, %s211
      %p213 = pneg %p100
      %p214 = pneg %p97
      %p215 = pneg %p121
      %p216 = pneg %p118
      %p217 = pneg %p147
      %p218 = pneg %p144
      %p219 = scmp.lt.s32.totalorder %s19, 1
      %s220 = scalar_select %p219, %s19, 1
      %s221 = smul.addr %s220, 8
      %s222 = scalar_lea.vmem %s4, %s221
      %p223 = scmp.lt.s32.totalorder %s19, 1
      %s224 = scalar_select %p223, %s19, 1
      %s225 = smul.addr %s224, 8
      %s226 = scalar_lea.vmem %s0, %s225
      %p227 = scmp.lt.s32.totalorder %s19, 1
      %s228 = scalar_select %p227, %s19, 1
      %s229 = smul.addr %s228, 4
      %s230 = scalar_lea.vmem %s1, %s229
      %p231 = scmp.lt.s32.totalorder %s20, 1
      %s232 = scalar_select %p231, %s20, 1
      %s233 = smul.addr %s232, 4
      %s234 = scalar_lea.vmem %s2, %s233
      %p235 = scmp.lt.s32.totalorder %s19, 1
      %s236 = scalar_select %p235, %s19, 1
      %s237 = smul.addr %s236, 8
      %s238 = scalar_lea.vmem %s4, %s237
      %p240 = scmp.eq.s32.totalorder %s20, 0
      // Predicated region
      $region37: #{tpu_custom_call.1} parent=35 // pred_check
        %p241 = pneg %p240
      $region38: #{tpu_custom_call.1} parent=35 // pred_check_branch
        %243 = sbr.rel (%p241) target = $region40
      $region39: #{tpu_custom_call.1} parent=35 // pred_region
        %v244 = vld [vmem:[%s226] sm:$0xff]
        %vm245 = vcmask 7168
        %246 = vst.msk [vmem:[#allocation2] sm:$0xff] %vm245, %v244
        %247 = vst.msk [vmem:[#allocation3] sm:$0xff] %vm245, 1.0
      $region40: #{tpu_custom_call.1} parent=35 // pred_fallthru
        _
      %v248 = vld [vmem:[%s230] sm:$0xf]
      %v249 = vld [vmem:[%s234] sm:$0xf]
      %vm250 = vcmask 261120
      %v252 = vsel %vm250, %v248, 0
      %v255 = vsel %vm250, %v249, 0
      %257 = vmatprep.subr.bf16.mxu0 0
      %258 = vmatpush1.bf16.xpose.msra.mxu0 %v255
      %259 = vmatprep.subr.bf16.mxu0 0
      %260 = vmatpush1.bf16.xpose.msra.mxu0 0
      %261 = vmatprep.subr.bf16.mxu0 0
      %262 = vmatpush1.bf16.xpose.msra.mxu0 0
      %263 = vmatprep.subr.bf16.mxu0 0
      %264 = vmatpush1.bf16.xpose.msra.mxu0 0
      %265 = vmatprep.subr.bf16.mxu0 0
      %266 = vmatpush1.bf16.xpose.msra.mxu0 0
      %267 = vmatprep.subr.bf16.mxu0 0
      %268 = vmatpush1.bf16.xpose.msra.mxu0 0
      %269 = vmatprep.subr.bf16.mxu0 0
      %270 = vmatpush1.bf16.xpose.msra.mxu0 0
      %271 = vmatprep.subr.bf16.mxu0 0
      %272 = vmatpush1.bf16.xpose.msra.mxu0 0
      %273 = vmatprep.subr.bf16.mxu0 0
      %274 = vmatpush1.bf16.xpose.msra.mxu0 0
      %275 = vmatprep.subr.bf16.mxu0 0
      %276 = vmatpush1.bf16.xpose.msra.mxu0 0
      %277 = vmatprep.subr.bf16.mxu0 0
      %278 = vmatpush1.bf16.xpose.msra.mxu0 0
      %279 = vmatprep.subr.bf16.mxu0 0
      %280 = vmatpush1.bf16.xpose.msra.mxu0 0
      %281 = vmatprep.subr.bf16.mxu0 0
      %282 = vmatpush1.bf16.xpose.msra.mxu0 0
      %283 = vmatprep.subr.bf16.mxu0 0
      %284 = vmatpush1.bf16.xpose.msra.mxu0 0
      %285 = vmatprep.subr.bf16.mxu0 0
      %286 = vmatpush1.bf16.xpose.msra.mxu0 0
      %287 = vmatprep.subr.bf16.mxu0 0
      %288 = vmatpush1.bf16.xpose.msra.mxu0 0
      %289 = vmatprep.mubr.bf16.mxu0 0
      %290 = vmatmul.mubr.bf16.gmra.mrb[0].mxu0 %v252
      %v291 = vpop.f32.mrb[0].mxu0
      %v292 = vadd.f32 0.0, %v291
      %v293 = vpop.f32.mrb[0].mxu0
      %v294 = vpop.f32.mrb[0].mxu0
      %v295 = vpop.f32.mrb[0].mxu0
      %296 = vdwg.mxu0
      %v297 = vld [vmem:[%s3] sm:$0xf]
      %v298 = vunpack.c.l.bf16 %v297
      %vm299 = vcmp.ne.f32.partialorder %v298, %v298
      %v300 = vmul.f32 %v292, %v298
      %v301 = vsel %vm299, -1e+30, %v300
      %v302 = vld [vmem:[#allocation2] sm:$0xff]
      %vm303 = vcmask 64512
      %v304 = vsel %vm303, %v301, -inf
      %305 = vmax.xlane.f32.xlu0 %v304
      %v306 = vpop.xlane.xlu0 %305
      %v307 = vmax.f32 %v302, %v306
      %309 = vset.pattern.permute.xlu0 0
      %310 = vperm.xlu0 %309, %v307
      %v311 = vpop.permute.xlu0 %310
      %v313 = vsub.f32 %v301, %v311
      %v314 = vmul.f32 %v313, 1.442695
      %v315 = vpow.pop %v314
      %v316 = vsel %vm303, %v315, 0.0
      %317 = vadd.xlane.f32.xlu0 %v316
      %v318 = vpop.xlane.xlu0 %317
      %v319 = vld [vmem:[#allocation3] sm:$0xff]
      %v320 = vsub.f32 %v302, %v307
      %v321 = vmul.f32 %v320, 1.442695
      %v322 = vpow.pop %v321
      %v323 = vmul.f32 %v319, %v322
      %v324 = vadd.f32 %v323, %v318
      %vm325 = vcmask 7168
      %326 = vst.msk [vmem:[#allocation3] sm:$0xff] %vm325, %v324
      %327 = vst.msk [vmem:[#allocation2] sm:$0xff] %vm325, %v307
      %p328 = scmp.eq.s32.totalorder %s20, 1
      // Predicated region
      $region41: #{tpu_custom_call.1} parent=35 // pred_check
        %p329 = pneg %p328
      $region42: #{tpu_custom_call.1} parent=35 // pred_check_branch
        %331 = sbr.rel (%p329) target = $region44
      $region43: #{tpu_custom_call.1} parent=35 // pred_region
        %v332 = vld [vmem:[#allocation2] sm:$0xff]
        %v333 = vld [vmem:[#allocation3] sm:$0xff]
        %v334 = vlog2.pop %v333
        %v335 = vmul.f32 %v334, 0.6931472
        %v336 = vadd.f32 %v332, %v335
        %v337 = vld [vmem:[%s226] sm:$0xff]
        %v338 = vsub.f32 %v336, %v337
        %339 = vst.msk [vmem:[%s238] sm:$0xff] %vm325, %v338
      $region44: #{tpu_custom_call.1} parent=35 // pred_fallthru
        _
      %p340 = scmp.lt.s32.totalorder %s19, 1
      %s341 = scalar_select %p340, %s19, 1
      %s342 = smul.addr %s341, 8
      %s343 = scalar_lea.vmem %s4, %s342
      // Predicated region
      $region45: #{tpu_custom_call.1} parent=35 // pred_check
        %p344 = pneg %p144
      $region46: #{tpu_custom_call.1} parent=35 // pred_check_branch
        %346 = sbr.rel (%p344) target = $region48
      $region47: #{tpu_custom_call.1} parent=35 // pred_region
        _
      $region48: #{tpu_custom_call.1} parent=35 // pred_fallthru
        _
    $region36: #{tpu_custom_call.1} parent=5 // pred_fallthru
      _
    %p347 = scmp.le.s32.totalorder 2, %s10
    // Predicated region
    $region49: #{tpu_custom_call.1} parent=5 // pred_check
      %p348 = pneg %p347
    $region50: #{tpu_custom_call.1} parent=5 // pred_check_branch
      %350 = sbr.rel (%p348) target = $region52
    $region51: #{tpu_custom_call.1} parent=5 // pred_region
      %s351 = ssub.s32 %s10, 2
      // Predicated region
      $region53: #{tpu_custom_call.1} parent=51 // pred_check
        %p352 = pneg %p150
      $region54: #{tpu_custom_call.1} parent=51 // pred_check_branch
        %354 = sbr.rel (%p352) target = $region56
      $region55: #{tpu_custom_call.1} parent=51 // pred_region
        %p355 = scmp.lt.s32.totalorder %s21, 1
        %s356 = scalar_select %p355, %s21, 1
        %s357 = smul.addr %s356, 8
        %s358 = scalar_lea.vmem %s4, %s357
      $region56: #{tpu_custom_call.1} parent=51 // pred_fallthru
        _
    $region52: #{tpu_custom_call.1} parent=5 // pred_fallthru
      _
  $region6: #{tpu_custom_call.1} parent=0 // loop_footer
    %s14 = sadd.s32 1, %s10
  $region7: #{tpu_custom_call.1} parent=0 // loop_footer_branch
    %9 = sbr.rel target = $region3
  $region8: #{tpu_custom_call.1} parent=0 // loop_exit
    _

</llo_original>
